<compile_context>
chip_gen: v5e
topology: v5e:2x2
jax: 0.10.0
libtpu: 0.0.40
codegen_flags: <defaults>
</compile_context>

<pallas_src>
import functools
import math

import jax
import jax.numpy as jnp
from jax import lax
from jax.experimental import pallas as pl
from jax.experimental.pallas import tpu as pltpu


def _cross_attn_kernel(dec_ref, enc_ref, wq_ref, bq_ref, wkv_ref, bkv_ref,
                       wp_ref, bp_ref, out_ref, *, n_head, batch_block):
    # Shapes seen by the kernel (one batch block):
    #   dec_ref : (Bb, T_dec, C)     enc_ref : (Bb, T_enc, C)
    #   wq_ref  : (C, C)    bq_ref : (1, C)
    #   wkv_ref : (C, 2C)   bkv_ref: (1, 2C)
    #   wp_ref  : (C, C)    bp_ref : (1, C)
    #   out_ref : (Bb, T_dec, C)
    Bb = batch_block
    T_dec, C = dec_ref.shape[1], dec_ref.shape[2]
    T_enc = enc_ref.shape[1]
    hd = C // n_head
    scale = 1.0 / math.sqrt(hd)

    # Flatten the batch block into rows -> one big projection matmul per stream.
    dec = dec_ref[...].reshape(Bb * T_dec, C)
    enc = enc_ref[...].reshape(Bb * T_enc, C)

    # Q-only projection for the decoder, KV-only projection for the encoder.
    q = jnp.dot(dec, wq_ref[...], preferred_element_type=jnp.float32) + bq_ref[...]
    q = q * scale                                   # fold 1/sqrt(hd) into q once
    kv = jnp.dot(enc, wkv_ref[...], preferred_element_type=jnp.float32) + bkv_ref[...]
    k = kv[:, :C]                                   # (Bb*T_enc, C)
    v = kv[:, C:]                                   # (Bb*T_enc, C)

    # Per-(batch, head) attention via static slices (no XLU relayout reshapes).
    y_rows = []
    for b in range(Bb):
        qb = q[b * T_dec:(b + 1) * T_dec, :]
        kb = k[b * T_enc:(b + 1) * T_enc, :]
        vb = v[b * T_enc:(b + 1) * T_enc, :]
        heads = []
        for h in range(n_head):
            qh = qb[:, h * hd:(h + 1) * hd]         # (T_dec, hd)
            kh = kb[:, h * hd:(h + 1) * hd]         # (T_enc, hd)
            vh = vb[:, h * hd:(h + 1) * hd]         # (T_enc, hd)
            # att[t, s] = sum_d qh[t, d] * kh[s, d]   (q already scaled)
            att = lax.dot_general(qh, kh, (((1,), (1,)), ((), ())),
                                  preferred_element_type=jnp.float32)
            att = att - jnp.max(att, axis=-1, keepdims=True)
            att = jnp.exp(att)
            # divide on the small (T_dec, 1) denominator, broadcast over the tile
            att = att * (1.0 / jnp.sum(att, axis=-1, keepdims=True))
            heads.append(jnp.dot(att, vh, preferred_element_type=jnp.float32))
        y_rows.append(jnp.concatenate(heads, axis=-1))            # (T_dec, C)
    y = jnp.concatenate(y_rows, axis=0) if Bb > 1 else y_rows[0]  # (Bb*T_dec, C)

    # Output projection.
    out = jnp.dot(y, wp_ref[...], preferred_element_type=jnp.float32) + bp_ref[...]
    out_ref[...] = out.reshape(Bb, T_dec, C).astype(out_ref.dtype)


def _pick_batch_block(B, T_rows):
    # Aim for >=128 rows per projection matmul (saturates v5e's 128-wide MXU;
    # also amortizes per-grid-step pipeline overhead on v6e/v7x).
    target = max(1, pl.cdiv(128, max(T_rows, 1)))
    bb = min(B, target)
    while B % bb:
        bb -= 1
    return bb


def cross_attention(encoder_embd, decoder_embd, params, n_head, *, batch_block=None):
    """encoder_embd: (B, T_enc, C), decoder_embd: (B, T_dec, C) -> (B, T_dec, C)."""
    w_attn, b_attn, w_proj, b_proj = params
    B, T_dec, C = decoder_embd.shape
    _, T_enc, _ = encoder_embd.shape

    # Split the shared c_attn into Q-only (decoder) and KV-only (encoder) pieces,
    # with consistently sliced biases.
    w_q = w_attn[:, :C]
    b_q = b_attn[:C].reshape(1, C)
    w_kv = w_attn[:, C:]
    b_kv = b_attn[C:].reshape(1, 2 * C)
    b_p = b_proj.reshape(1, C)

    if batch_block is None:
        batch_block = _pick_batch_block(B, min(T_dec, T_enc))
    assert B % batch_block == 0, "batch_block must divide B"
    grid = (B // batch_block,)

    kernel = functools.partial(_cross_attn_kernel, n_head=n_head,
                               batch_block=batch_block)

    return pl.pallas_call(
        kernel,
        out_shape=jax.ShapeDtypeStruct((B, T_dec, C), decoder_embd.dtype),
        grid_spec=pltpu.PrefetchScalarGridSpec(
            num_scalar_prefetch=0,
            grid=grid,
            in_specs=[
                pl.BlockSpec((batch_block, T_dec, C), lambda i: (i, 0, 0)),  # decoder
                pl.BlockSpec((batch_block, T_enc, C), lambda i: (i, 0, 0)),  # encoder
                pl.BlockSpec((C, C), lambda i: (0, 0)),          # W_q
                pl.BlockSpec((1, C), lambda i: (0, 0)),          # b_q
                pl.BlockSpec((C, 2 * C), lambda i: (0, 0)),      # W_kv
                pl.BlockSpec((1, 2 * C), lambda i: (0, 0)),      # b_kv
                pl.BlockSpec((C, C), lambda i: (0, 0)),          # W_proj
                pl.BlockSpec((1, C), lambda i: (0, 0)),          # b_proj
            ],
            out_specs=pl.BlockSpec((batch_block, T_dec, C), lambda i: (i, 0, 0)),
        ),
        compiler_params=pltpu.CompilerParams(
            dimension_semantics=("parallel",)),
    )(decoder_embd, encoder_embd, w_q, b_q, w_kv, b_kv, w_proj, b_p)


def cross_attention_ref(encoder_embd, decoder_embd, params, n_head):
    """Pure-JAX reference mirroring the PyTorch forward."""
    w_attn, b_attn, w_proj, b_proj = params
    B, T_dec, C = decoder_embd.shape
    _, T_enc, _ = encoder_embd.shape
    hd = C // n_head

    qkv_dec = decoder_embd @ w_attn + b_attn
    qkv_enc = encoder_embd @ w_attn + b_attn
    q_dec = qkv_dec[..., :C]
    k_enc = qkv_enc[..., C:2 * C]
    v_enc = qkv_enc[..., 2 * C:]

    q = q_dec.reshape(B, T_dec, n_head, hd).transpose(0, 2, 1, 3)
    k = k_enc.reshape(B, T_enc, n_head, hd).transpose(0, 2, 1, 3)
    v = v_enc.reshape(B, T_enc, n_head, hd).transpose(0, 2, 1, 3)

    att = (q @ jnp.swapaxes(k, -2, -1)) * (1.0 / math.sqrt(hd))
    att = jax.nn.softmax(att, axis=-1)
    y = att @ v
    y = y.transpose(0, 2, 1, 3).reshape(B, T_dec, C)
    return y @ w_proj + b_proj


if __name__ == "__main__":
    # cfg: n_embd=32, n_head=4, block_size=16 (block_size / tril bias unused in forward)
    n_embd, n_head = 32, 4
    B, T_enc, T_dec = 2, 8, 8

    key = jax.random.PRNGKey(0)
    k1, k2, k3, k4, k5, k6 = jax.random.split(key, 6)

    scale = 1.0 / math.sqrt(n_embd)
    w_attn = jax.random.normal(k1, (n_embd, 3 * n_embd), jnp.float32) * scale
    b_attn = jax.random.normal(k2, (3 * n_embd,), jnp.float32) * 0.01
    w_proj = jax.random.normal(k3, (n_embd, n_embd), jnp.float32) * scale
    b_proj = jax.random.normal(k4, (n_embd,), jnp.float32) * 0.01
    params = (w_attn, b_attn, w_proj, b_proj)

    encoder_embd = jax.random.normal(k5, (B, T_enc, n_embd), jnp.float32)
    decoder_embd = jax.random.normal(k6, (B, T_dec, n_embd), jnp.float32)

    out = cross_attention(encoder_embd, decoder_embd, params, n_head)
    out = jax.block_until_ready(out)

    ref = cross_attention_ref(encoder_embd, decoder_embd, params, n_head)
    assert out.shape == (B, T_dec, n_embd)
    assert jnp.allclose(out, ref, atol=1e-4, rtol=1e-4), "mismatch vs JAX reference"

    print("KERNEL_OK")
</pallas_src>

<mosaic_0001>
module attributes {stable_mosaic.version = 11 : i64} {
  func.func @_cross_attn_kernel(%arg0: i32, %arg1: memref<2x8x32xf32, #tpu.memory_space<vmem>>, %arg2: memref<2x8x32xf32, #tpu.memory_space<vmem>>, %arg3: memref<32x32xf32, #tpu.memory_space<vmem>>, %arg4: memref<1x32xf32, #tpu.memory_space<vmem>>, %arg5: memref<32x64xf32, #tpu.memory_space<vmem>>, %arg6: memref<1x64xf32, #tpu.memory_space<vmem>>, %arg7: memref<32x32xf32, #tpu.memory_space<vmem>>, %arg8: memref<1x32xf32, #tpu.memory_space<vmem>>, %arg9: memref<2x8x32xf32, #tpu.memory_space<vmem>>) attributes {dimension_semantics = [#tpu.dimension_semantics<parallel>], iteration_bounds = array<i64: 1>, scalar_prefetch = 0 : i64, scratch_operands = 0 : i64, tpu.core_type = #tpu.core_type<tc>, window_params = [{transform_indices = @transform_0, window_bounds = array<i64: 2, 8, 32>}, {transform_indices = @transform_1, window_bounds = array<i64: 2, 8, 32>}, {pipeline_mode = #tpu.pipeline_mode<synchronous>, transform_indices = @transform_2, window_bounds = array<i64: 32, 32>}, {pipeline_mode = #tpu.pipeline_mode<synchronous>, transform_indices = @transform_3, window_bounds = array<i64: 1, 32>}, {pipeline_mode = #tpu.pipeline_mode<synchronous>, transform_indices = @transform_4, window_bounds = array<i64: 32, 64>}, {pipeline_mode = #tpu.pipeline_mode<synchronous>, transform_indices = @transform_5, window_bounds = array<i64: 1, 64>}, {pipeline_mode = #tpu.pipeline_mode<synchronous>, transform_indices = @transform_6, window_bounds = array<i64: 32, 32>}, {pipeline_mode = #tpu.pipeline_mode<synchronous>, transform_indices = @transform_7, window_bounds = array<i64: 1, 32>}, {transform_indices = @transform_8, window_bounds = array<i64: 2, 8, 32>}]} {
    %c0 = arith.constant 0 : index
    %c0_0 = arith.constant 0 : index
    %c0_1 = arith.constant 0 : index
    %0 = vector.load %arg1[%c0, %c0_0, %c0_1] : memref<2x8x32xf32, #tpu.memory_space<vmem>>, vector<2x8x32xf32>
    %1 = vector.shape_cast %0 : vector<2x8x32xf32> to vector<16x32xf32>
    %c0_2 = arith.constant 0 : index
    %c0_3 = arith.constant 0 : index
    %c0_4 = arith.constant 0 : index
    %2 = vector.load %arg2[%c0_2, %c0_3, %c0_4] : memref<2x8x32xf32, #tpu.memory_space<vmem>>, vector<2x8x32xf32>
    %3 = vector.shape_cast %2 : vector<2x8x32xf32> to vector<16x32xf32>
    %c0_5 = arith.constant 0 : index
    %c0_6 = arith.constant 0 : index
    %4 = vector.load %arg3[%c0_5, %c0_6] : memref<32x32xf32, #tpu.memory_space<vmem>>, vector<32x32xf32>
    %cst = arith.constant dense<0.000000e+00> : vector<16x32xf32>
    %5 = tpu.matmul %1, %4, %cst {dimension_numbers = #tpu.dot_dimension_numbers<[1], [0], [0], [1], [0, 0, 1, 1], [], []>} : vector<16x32xf32>, vector<32x32xf32>, vector<16x32xf32> -> vector<16x32xf32>
    %c0_7 = arith.constant 0 : index
    %c0_8 = arith.constant 0 : index
    %6 = vector.load %arg4[%c0_7, %c0_8] : memref<1x32xf32, #tpu.memory_space<vmem>>, vector<1x32xf32>
    %7 = vector.broadcast %6 : vector<1x32xf32> to vector<16x32xf32>
    %8 = arith.addf %5, %7 : vector<16x32xf32>
    %cst_9 = arith.constant 0.353553385 : f32
    %9 = vector.broadcast %cst_9 : f32 to vector<16x32xf32>
    %10 = arith.mulf %8, %9 : vector<16x32xf32>
    %c0_10 = arith.constant 0 : index
    %c0_11 = arith.constant 0 : index
    %11 = vector.load %arg5[%c0_10, %c0_11] : memref<32x64xf32, #tpu.memory_space<vmem>>, vector<32x64xf32>
    %cst_12 = arith.constant dense<0.000000e+00> : vector<16x64xf32>
    %12 = tpu.matmul %3, %11, %cst_12 {dimension_numbers = #tpu.dot_dimension_numbers<[1], [0], [0], [1], [0, 0, 1, 1], [], []>} : vector<16x32xf32>, vector<32x64xf32>, vector<16x64xf32> -> vector<16x64xf32>
    %c0_13 = arith.constant 0 : index
    %c0_14 = arith.constant 0 : index
    %13 = vector.load %arg6[%c0_13, %c0_14] : memref<1x64xf32, #tpu.memory_space<vmem>>, vector<1x64xf32>
    %14 = vector.broadcast %13 : vector<1x64xf32> to vector<16x64xf32>
    %15 = arith.addf %12, %14 : vector<16x64xf32>
    %16 = vector.extract_strided_slice %15 {offsets = [0, 0], sizes = [16, 32], strides = [1, 1]} : vector<16x64xf32> to vector<16x32xf32>
    %17 = vector.extract_strided_slice %15 {offsets = [0, 32], sizes = [16, 32], strides = [1, 1]} : vector<16x64xf32> to vector<16x32xf32>
    %18 = vector.extract_strided_slice %10 {offsets = [0, 0], sizes = [8, 32], strides = [1, 1]} : vector<16x32xf32> to vector<8x32xf32>
    %19 = vector.extract_strided_slice %16 {offsets = [0, 0], sizes = [8, 32], strides = [1, 1]} : vector<16x32xf32> to vector<8x32xf32>
    %20 = vector.extract_strided_slice %17 {offsets = [0, 0], sizes = [8, 32], strides = [1, 1]} : vector<16x32xf32> to vector<8x32xf32>
    %21 = vector.extract_strided_slice %18 {offsets = [0, 0], sizes = [8, 8], strides = [1, 1]} : vector<8x32xf32> to vector<8x8xf32>
    %22 = vector.extract_strided_slice %19 {offsets = [0, 0], sizes = [8, 8], strides = [1, 1]} : vector<8x32xf32> to vector<8x8xf32>
    %23 = vector.extract_strided_slice %20 {offsets = [0, 0], sizes = [8, 8], strides = [1, 1]} : vector<8x32xf32> to vector<8x8xf32>
    %cst_15 = arith.constant dense<0.000000e+00> : vector<8x8xf32>
    %24 = tpu.matmul %21, %22, %cst_15 {dimension_numbers = #tpu.dot_dimension_numbers<[1], [1], [0], [0], [0, 0, 1, 0], [], []>} : vector<8x8xf32>, vector<8x8xf32>, vector<8x8xf32> -> vector<8x8xf32>
    %cst_16 = arith.constant dense<0xFF800000> : vector<8xf32>
    %25 = vector.multi_reduction <maximumf>, %24, %cst_16 [1] : vector<8x8xf32> to vector<8xf32>
    %26 = vector.shape_cast %25 : vector<8xf32> to vector<8x1xf32>
    %27 = vector.broadcast %26 : vector<8x1xf32> to vector<8x8xf32>
    %28 = arith.subf %24, %27 : vector<8x8xf32>
    %29 = math.exp %28 : vector<8x8xf32>
    %cst_17 = arith.constant dense<0.000000e+00> : vector<8xf32>
    %30 = vector.multi_reduction <add>, %29, %cst_17 [1] : vector<8x8xf32> to vector<8xf32>
    %31 = vector.shape_cast %30 : vector<8xf32> to vector<8x1xf32>
    %cst_18 = arith.constant 1.000000e+00 : f32
    %32 = vector.broadcast %cst_18 : f32 to vector<8x1xf32>
    %33 = arith.divf %32, %31 : vector<8x1xf32>
    %34 = vector.broadcast %33 : vector<8x1xf32> to vector<8x8xf32>
    %35 = arith.mulf %29, %34 : vector<8x8xf32>
    %cst_19 = arith.constant dense<0.000000e+00> : vector<8x8xf32>
    %36 = tpu.matmul %35, %23, %cst_19 {dimension_numbers = #tpu.dot_dimension_numbers<[1], [0], [0], [1], [0, 0, 1, 1], [], []>} : vector<8x8xf32>, vector<8x8xf32>, vector<8x8xf32> -> vector<8x8xf32>
    %37 = vector.extract_strided_slice %18 {offsets = [0, 8], sizes = [8, 8], strides = [1, 1]} : vector<8x32xf32> to vector<8x8xf32>
    %38 = vector.extract_strided_slice %19 {offsets = [0, 8], sizes = [8, 8], strides = [1, 1]} : vector<8x32xf32> to vector<8x8xf32>
    %39 = vector.extract_strided_slice %20 {offsets = [0, 8], sizes = [8, 8], strides = [1, 1]} : vector<8x32xf32> to vector<8x8xf32>
    %cst_20 = arith.constant dense<0.000000e+00> : vector<8x8xf32>
    %40 = tpu.matmul %37, %38, %cst_20 {dimension_numbers = #tpu.dot_dimension_numbers<[1], [1], [0], [0], [0, 0, 1, 0], [], []>} : vector<8x8xf32>, vector<8x8xf32>, vector<8x8xf32> -> vector<8x8xf32>
    %cst_21 = arith.constant dense<0xFF800000> : vector<8xf32>
    %41 = vector.multi_reduction <maximumf>, %40, %cst_21 [1] : vector<8x8xf32> to vector<8xf32>
    %42 = vector.shape_cast %41 : vector<8xf32> to vector<8x1xf32>
    %43 = vector.broadcast %42 : vector<8x1xf32> to vector<8x8xf32>
    %44 = arith.subf %40, %43 : vector<8x8xf32>
    %45 = math.exp %44 : vector<8x8xf32>
    %cst_22 = arith.constant dense<0.000000e+00> : vector<8xf32>
    %46 = vector.multi_reduction <add>, %45, %cst_22 [1] : vector<8x8xf32> to vector<8xf32>
    %47 = vector.shape_cast %46 : vector<8xf32> to vector<8x1xf32>
    %cst_23 = arith.constant 1.000000e+00 : f32
    %48 = vector.broadcast %cst_23 : f32 to vector<8x1xf32>
    %49 = arith.divf %48, %47 : vector<8x1xf32>
    %50 = vector.broadcast %49 : vector<8x1xf32> to vector<8x8xf32>
    %51 = arith.mulf %45, %50 : vector<8x8xf32>
    %cst_24 = arith.constant dense<0.000000e+00> : vector<8x8xf32>
    %52 = tpu.matmul %51, %39, %cst_24 {dimension_numbers = #tpu.dot_dimension_numbers<[1], [0], [0], [1], [0, 0, 1, 1], [], []>} : vector<8x8xf32>, vector<8x8xf32>, vector<8x8xf32> -> vector<8x8xf32>
    %53 = vector.extract_strided_slice %18 {offsets = [0, 16], sizes = [8, 8], strides = [1, 1]} : vector<8x32xf32> to vector<8x8xf32>
    %54 = vector.extract_strided_slice %19 {offsets = [0, 16], sizes = [8, 8], strides = [1, 1]} : vector<8x32xf32> to vector<8x8xf32>
    %55 = vector.extract_strided_slice %20 {offsets = [0, 16], sizes = [8, 8], strides = [1, 1]} : vector<8x32xf32> to vector<8x8xf32>
    %cst_25 = arith.constant dense<0.000000e+00> : vector<8x8xf32>
    %56 = tpu.matmul %53, %54, %cst_25 {dimension_numbers = #tpu.dot_dimension_numbers<[1], [1], [0], [0], [0, 0, 1, 0], [], []>} : vector<8x8xf32>, vector<8x8xf32>, vector<8x8xf32> -> vector<8x8xf32>
    %cst_26 = arith.constant dense<0xFF800000> : vector<8xf32>
    %57 = vector.multi_reduction <maximumf>, %56, %cst_26 [1] : vector<8x8xf32> to vector<8xf32>
    %58 = vector.shape_cast %57 : vector<8xf32> to vector<8x1xf32>
    %59 = vector.broadcast %58 : vector<8x1xf32> to vector<8x8xf32>
    %60 = arith.subf %56, %59 : vector<8x8xf32>
    %61 = math.exp %60 : vector<8x8xf32>
    %cst_27 = arith.constant dense<0.000000e+00> : vector<8xf32>
    %62 = vector.multi_reduction <add>, %61, %cst_27 [1] : vector<8x8xf32> to vector<8xf32>
    %63 = vector.shape_cast %62 : vector<8xf32> to vector<8x1xf32>
    %cst_28 = arith.constant 1.000000e+00 : f32
    %64 = vector.broadcast %cst_28 : f32 to vector<8x1xf32>
    %65 = arith.divf %64, %63 : vector<8x1xf32>
    %66 = vector.broadcast %65 : vector<8x1xf32> to vector<8x8xf32>
    %67 = arith.mulf %61, %66 : vector<8x8xf32>
    %cst_29 = arith.constant dense<0.000000e+00> : vector<8x8xf32>
    %68 = tpu.matmul %67, %55, %cst_29 {dimension_numbers = #tpu.dot_dimension_numbers<[1], [0], [0], [1], [0, 0, 1, 1], [], []>} : vector<8x8xf32>, vector<8x8xf32>, vector<8x8xf32> -> vector<8x8xf32>
    %69 = vector.extract_strided_slice %18 {offsets = [0, 24], sizes = [8, 8], strides = [1, 1]} : vector<8x32xf32> to vector<8x8xf32>
    %70 = vector.extract_strided_slice %19 {offsets = [0, 24], sizes = [8, 8], strides = [1, 1]} : vector<8x32xf32> to vector<8x8xf32>
    %71 = vector.extract_strided_slice %20 {offsets = [0, 24], sizes = [8, 8], strides = [1, 1]} : vector<8x32xf32> to vector<8x8xf32>
    %cst_30 = arith.constant dense<0.000000e+00> : vector<8x8xf32>
    %72 = tpu.matmul %69, %70, %cst_30 {dimension_numbers = #tpu.dot_dimension_numbers<[1], [1], [0], [0], [0, 0, 1, 0], [], []>} : vector<8x8xf32>, vector<8x8xf32>, vector<8x8xf32> -> vector<8x8xf32>
    %cst_31 = arith.constant dense<0xFF800000> : vector<8xf32>
    %73 = vector.multi_reduction <maximumf>, %72, %cst_31 [1] : vector<8x8xf32> to vector<8xf32>
    %74 = vector.shape_cast %73 : vector<8xf32> to vector<8x1xf32>
    %75 = vector.broadcast %74 : vector<8x1xf32> to vector<8x8xf32>
    %76 = arith.subf %72, %75 : vector<8x8xf32>
    %77 = math.exp %76 : vector<8x8xf32>
    %cst_32 = arith.constant dense<0.000000e+00> : vector<8xf32>
    %78 = vector.multi_reduction <add>, %77, %cst_32 [1] : vector<8x8xf32> to vector<8xf32>
    %79 = vector.shape_cast %78 : vector<8xf32> to vector<8x1xf32>
    %cst_33 = arith.constant 1.000000e+00 : f32
    %80 = vector.broadcast %cst_33 : f32 to vector<8x1xf32>
    %81 = arith.divf %80, %79 : vector<8x1xf32>
    %82 = vector.broadcast %81 : vector<8x1xf32> to vector<8x8xf32>
    %83 = arith.mulf %77, %82 : vector<8x8xf32>
    %cst_34 = arith.constant dense<0.000000e+00> : vector<8x8xf32>
    %84 = tpu.matmul %83, %71, %cst_34 {dimension_numbers = #tpu.dot_dimension_numbers<[1], [0], [0], [1], [0, 0, 1, 1], [], []>} : vector<8x8xf32>, vector<8x8xf32>, vector<8x8xf32> -> vector<8x8xf32>
    %85 = tpu.concatenate %36, %52, %68, %84 in 1 : vector<8x8xf32>, vector<8x8xf32>, vector<8x8xf32>, vector<8x8xf32> -> vector<8x32xf32>
    %86 = vector.extract_strided_slice %10 {offsets = [8, 0], sizes = [8, 32], strides = [1, 1]} : vector<16x32xf32> to vector<8x32xf32>
    %87 = vector.extract_strided_slice %16 {offsets = [8, 0], sizes = [8, 32], strides = [1, 1]} : vector<16x32xf32> to vector<8x32xf32>
    %88 = vector.extract_strided_slice %17 {offsets = [8, 0], sizes = [8, 32], strides = [1, 1]} : vector<16x32xf32> to vector<8x32xf32>
    %89 = vector.extract_strided_slice %86 {offsets = [0, 0], sizes = [8, 8], strides = [1, 1]} : vector<8x32xf32> to vector<8x8xf32>
    %90 = vector.extract_strided_slice %87 {offsets = [0, 0], sizes = [8, 8], strides = [1, 1]} : vector<8x32xf32> to vector<8x8xf32>
    %91 = vector.extract_strided_slice %88 {offsets = [0, 0], sizes = [8, 8], strides = [1, 1]} : vector<8x32xf32> to vector<8x8xf32>
    %cst_35 = arith.constant dense<0.000000e+00> : vector<8x8xf32>
    %92 = tpu.matmul %89, %90, %cst_35 {dimension_numbers = #tpu.dot_dimension_numbers<[1], [1], [0], [0], [0, 0, 1, 0], [], []>} : vector<8x8xf32>, vector<8x8xf32>, vector<8x8xf32> -> vector<8x8xf32>
    %cst_36 = arith.constant dense<0xFF800000> : vector<8xf32>
    %93 = vector.multi_reduction <maximumf>, %92, %cst_36 [1] : vector<8x8xf32> to vector<8xf32>
    %94 = vector.shape_cast %93 : vector<8xf32> to vector<8x1xf32>
    %95 = vector.broadcast %94 : vector<8x1xf32> to vector<8x8xf32>
    %96 = arith.subf %92, %95 : vector<8x8xf32>
    %97 = math.exp %96 : vector<8x8xf32>
    %cst_37 = arith.constant dense<0.000000e+00> : vector<8xf32>
    %98 = vector.multi_reduction <add>, %97, %cst_37 [1] : vector<8x8xf32> to vector<8xf32>
    %99 = vector.shape_cast %98 : vector<8xf32> to vector<8x1xf32>
    %cst_38 = arith.constant 1.000000e+00 : f32
    %100 = vector.broadcast %cst_38 : f32 to vector<8x1xf32>
    %101 = arith.divf %100, %99 : vector<8x1xf32>
    %102 = vector.broadcast %101 : vector<8x1xf32> to vector<8x8xf32>
    %103 = arith.mulf %97, %102 : vector<8x8xf32>
    %cst_39 = arith.constant dense<0.000000e+00> : vector<8x8xf32>
    %104 = tpu.matmul %103, %91, %cst_39 {dimension_numbers = #tpu.dot_dimension_numbers<[1], [0], [0], [1], [0, 0, 1, 1], [], []>} : vector<8x8xf32>, vector<8x8xf32>, vector<8x8xf32> -> vector<8x8xf32>
    %105 = vector.extract_strided_slice %86 {offsets = [0, 8], sizes = [8, 8], strides = [1, 1]} : vector<8x32xf32> to vector<8x8xf32>
    %106 = vector.extract_strided_slice %87 {offsets = [0, 8], sizes = [8, 8], strides = [1, 1]} : vector<8x32xf32> to vector<8x8xf32>
    %107 = vector.extract_strided_slice %88 {offsets = [0, 8], sizes = [8, 8], strides = [1, 1]} : vector<8x32xf32> to vector<8x8xf32>
    %cst_40 = arith.constant dense<0.000000e+00> : vector<8x8xf32>
    %108 = tpu.matmul %105, %106, %cst_40 {dimension_numbers = #tpu.dot_dimension_numbers<[1], [1], [0], [0], [0, 0, 1, 0], [], []>} : vector<8x8xf32>, vector<8x8xf32>, vector<8x8xf32> -> vector<8x8xf32>
    %cst_41 = arith.constant dense<0xFF800000> : vector<8xf32>
    %109 = vector.multi_reduction <maximumf>, %108, %cst_41 [1] : vector<8x8xf32> to vector<8xf32>
    %110 = vector.shape_cast %109 : vector<8xf32> to vector<8x1xf32>
    %111 = vector.broadcast %110 : vector<8x1xf32> to vector<8x8xf32>
    %112 = arith.subf %108, %111 : vector<8x8xf32>
    %113 = math.exp %112 : vector<8x8xf32>
    %cst_42 = arith.constant dense<0.000000e+00> : vector<8xf32>
    %114 = vector.multi_reduction <add>, %113, %cst_42 [1] : vector<8x8xf32> to vector<8xf32>
    %115 = vector.shape_cast %114 : vector<8xf32> to vector<8x1xf32>
    %cst_43 = arith.constant 1.000000e+00 : f32
    %116 = vector.broadcast %cst_43 : f32 to vector<8x1xf32>
    %117 = arith.divf %116, %115 : vector<8x1xf32>
    %118 = vector.broadcast %117 : vector<8x1xf32> to vector<8x8xf32>
    %119 = arith.mulf %113, %118 : vector<8x8xf32>
    %cst_44 = arith.constant dense<0.000000e+00> : vector<8x8xf32>
    %120 = tpu.matmul %119, %107, %cst_44 {dimension_numbers = #tpu.dot_dimension_numbers<[1], [0], [0], [1], [0, 0, 1, 1], [], []>} : vector<8x8xf32>, vector<8x8xf32>, vector<8x8xf32> -> vector<8x8xf32>
    %121 = vector.extract_strided_slice %86 {offsets = [0, 16], sizes = [8, 8], strides = [1, 1]} : vector<8x32xf32> to vector<8x8xf32>
    %122 = vector.extract_strided_slice %87 {offsets = [0, 16], sizes = [8, 8], strides = [1, 1]} : vector<8x32xf32> to vector<8x8xf32>
    %123 = vector.extract_strided_slice %88 {offsets = [0, 16], sizes = [8, 8], strides = [1, 1]} : vector<8x32xf32> to vector<8x8xf32>
    %cst_45 = arith.constant dense<0.000000e+00> : vector<8x8xf32>
    %124 = tpu.matmul %121, %122, %cst_45 {dimension_numbers = #tpu.dot_dimension_numbers<[1], [1], [0], [0], [0, 0, 1, 0], [], []>} : vector<8x8xf32>, vector<8x8xf32>, vector<8x8xf32> -> vector<8x8xf32>
    %cst_46 = arith.constant dense<0xFF800000> : vector<8xf32>
    %125 = vector.multi_reduction <maximumf>, %124, %cst_46 [1] : vector<8x8xf32> to vector<8xf32>
    %126 = vector.shape_cast %125 : vector<8xf32> to vector<8x1xf32>
    %127 = vector.broadcast %126 : vector<8x1xf32> to vector<8x8xf32>
    %128 = arith.subf %124, %127 : vector<8x8xf32>
    %129 = math.exp %128 : vector<8x8xf32>
    %cst_47 = arith.constant dense<0.000000e+00> : vector<8xf32>
    %130 = vector.multi_reduction <add>, %129, %cst_47 [1] : vector<8x8xf32> to vector<8xf32>
    %131 = vector.shape_cast %130 : vector<8xf32> to vector<8x1xf32>
    %cst_48 = arith.constant 1.000000e+00 : f32
    %132 = vector.broadcast %cst_48 : f32 to vector<8x1xf32>
    %133 = arith.divf %132, %131 : vector<8x1xf32>
    %134 = vector.broadcast %133 : vector<8x1xf32> to vector<8x8xf32>
    %135 = arith.mulf %129, %134 : vector<8x8xf32>
    %cst_49 = arith.constant dense<0.000000e+00> : vector<8x8xf32>
    %136 = tpu.matmul %135, %123, %cst_49 {dimension_numbers = #tpu.dot_dimension_numbers<[1], [0], [0], [1], [0, 0, 1, 1], [], []>} : vector<8x8xf32>, vector<8x8xf32>, vector<8x8xf32> -> vector<8x8xf32>
    %137 = vector.extract_strided_slice %86 {offsets = [0, 24], sizes = [8, 8], strides = [1, 1]} : vector<8x32xf32> to vector<8x8xf32>
    %138 = vector.extract_strided_slice %87 {offsets = [0, 24], sizes = [8, 8], strides = [1, 1]} : vector<8x32xf32> to vector<8x8xf32>
    %139 = vector.extract_strided_slice %88 {offsets = [0, 24], sizes = [8, 8], strides = [1, 1]} : vector<8x32xf32> to vector<8x8xf32>
    %cst_50 = arith.constant dense<0.000000e+00> : vector<8x8xf32>
    %140 = tpu.matmul %137, %138, %cst_50 {dimension_numbers = #tpu.dot_dimension_numbers<[1], [1], [0], [0], [0, 0, 1, 0], [], []>} : vector<8x8xf32>, vector<8x8xf32>, vector<8x8xf32> -> vector<8x8xf32>
    %cst_51 = arith.constant dense<0xFF800000> : vector<8xf32>
    %141 = vector.multi_reduction <maximumf>, %140, %cst_51 [1] : vector<8x8xf32> to vector<8xf32>
    %142 = vector.shape_cast %141 : vector<8xf32> to vector<8x1xf32>
    %143 = vector.broadcast %142 : vector<8x1xf32> to vector<8x8xf32>
    %144 = arith.subf %140, %143 : vector<8x8xf32>
    %145 = math.exp %144 : vector<8x8xf32>
    %cst_52 = arith.constant dense<0.000000e+00> : vector<8xf32>
    %146 = vector.multi_reduction <add>, %145, %cst_52 [1] : vector<8x8xf32> to vector<8xf32>
    %147 = vector.shape_cast %146 : vector<8xf32> to vector<8x1xf32>
    %cst_53 = arith.constant 1.000000e+00 : f32
    %148 = vector.broadcast %cst_53 : f32 to vector<8x1xf32>
    %149 = arith.divf %148, %147 : vector<8x1xf32>
    %150 = vector.broadcast %149 : vector<8x1xf32> to vector<8x8xf32>
    %151 = arith.mulf %145, %150 : vector<8x8xf32>
    %cst_54 = arith.constant dense<0.000000e+00> : vector<8x8xf32>
    %152 = tpu.matmul %151, %139, %cst_54 {dimension_numbers = #tpu.dot_dimension_numbers<[1], [0], [0], [1], [0, 0, 1, 1], [], []>} : vector<8x8xf32>, vector<8x8xf32>, vector<8x8xf32> -> vector<8x8xf32>
    %153 = tpu.concatenate %104, %120, %136, %152 in 1 : vector<8x8xf32>, vector<8x8xf32>, vector<8x8xf32>, vector<8x8xf32> -> vector<8x32xf32>
    %154 = tpu.concatenate %85, %153 in 0 : vector<8x32xf32>, vector<8x32xf32> -> vector<16x32xf32>
    %c0_55 = arith.constant 0 : index
    %c0_56 = arith.constant 0 : index
    %155 = vector.load %arg7[%c0_55, %c0_56] : memref<32x32xf32, #tpu.memory_space<vmem>>, vector<32x32xf32>
    %cst_57 = arith.constant dense<0.000000e+00> : vector<16x32xf32>
    %156 = tpu.matmul %154, %155, %cst_57 {dimension_numbers = #tpu.dot_dimension_numbers<[1], [0], [0], [1], [0, 0, 1, 1], [], []>} : vector<16x32xf32>, vector<32x32xf32>, vector<16x32xf32> -> vector<16x32xf32>
    %c0_58 = arith.constant 0 : index
    %c0_59 = arith.constant 0 : index
    %157 = vector.load %arg8[%c0_58, %c0_59] : memref<1x32xf32, #tpu.memory_space<vmem>>, vector<1x32xf32>
    %158 = vector.broadcast %157 : vector<1x32xf32> to vector<16x32xf32>
    %159 = arith.addf %156, %158 : vector<16x32xf32>
    %160 = vector.shape_cast %159 : vector<16x32xf32> to vector<2x8x32xf32>
    %c0_60 = arith.constant 0 : index
    %c0_61 = arith.constant 0 : index
    %c0_62 = arith.constant 0 : index
    %161 = vector.load %arg9[%c0_60, %c0_61, %c0_62] : memref<2x8x32xf32, #tpu.memory_space<vmem>>, vector<2x8x32xf32>
    tpu.vector_store %arg9[%c0_60, %c0_61, %c0_62], %160 {strides = array<i32>} : memref<2x8x32xf32, #tpu.memory_space<vmem>>, vector<2x8x32xf32>,
    return
  }
  func.func @transform_0(%arg0: i32) -> (i32, i32, i32) {
    %c0_i32 = arith.constant 0 : i32
    %c0_i32_0 = arith.constant 0 : i32
    %c0_i32_1 = arith.constant 0 : i32
    return %arg0, %c0_i32, %c0_i32_0 : i32, i32, i32
  }
  func.func @transform_1(%arg0: i32) -> (i32, i32, i32) {
    %c0_i32 = arith.constant 0 : i32
    %c0_i32_0 = arith.constant 0 : i32
    %c0_i32_1 = arith.constant 0 : i32
    return %arg0, %c0_i32, %c0_i32_0 : i32, i32, i32
  }
  func.func @transform_2(%arg0: i32) -> (i32, i32) {
    %c0_i32 = arith.constant 0 : i32
    %c0_i32_0 = arith.constant 0 : i32
    %c0_i32_1 = arith.constant 0 : i32
    return %c0_i32, %c0_i32_0 : i32, i32
  }
  func.func @transform_3(%arg0: i32) -> (i32, i32) {
    %c0_i32 = arith.constant 0 : i32
    %c0_i32_0 = arith.constant 0 : i32
    %c0_i32_1 = arith.constant 0 : i32
    return %c0_i32, %c0_i32_0 : i32, i32
  }
  func.func @transform_4(%arg0: i32) -> (i32, i32) {
    %c0_i32 = arith.constant 0 : i32
    %c0_i32_0 = arith.constant 0 : i32
    %c0_i32_1 = arith.constant 0 : i32
    return %c0_i32, %c0_i32_0 : i32, i32
  }
  func.func @transform_5(%arg0: i32) -> (i32, i32) {
    %c0_i32 = arith.constant 0 : i32
    %c0_i32_0 = arith.constant 0 : i32
    %c0_i32_1 = arith.constant 0 : i32
    return %c0_i32, %c0_i32_0 : i32, i32
  }
  func.func @transform_6(%arg0: i32) -> (i32, i32) {
    %c0_i32 = arith.constant 0 : i32
    %c0_i32_0 = arith.constant 0 : i32
    %c0_i32_1 = arith.constant 0 : i32
    return %c0_i32, %c0_i32_0 : i32, i32
  }
  func.func @transform_7(%arg0: i32) -> (i32, i32) {
    %c0_i32 = arith.constant 0 : i32
    %c0_i32_0 = arith.constant 0 : i32
    %c0_i32_1 = arith.constant 0 : i32
    return %c0_i32, %c0_i32_0 : i32, i32
  }
  func.func @transform_8(%arg0: i32) -> (i32, i32, i32) {
    %c0_i32 = arith.constant 0 : i32
    %c0_i32_0 = arith.constant 0 : i32
    %c0_i32_1 = arith.constant 0 : i32
    return %arg0, %c0_i32, %c0_i32_0 : i32, i32, i32
  }
}

</mosaic_0001>

<llo_original>
// kernel: tpu_custom_call.1
$region0: #{tpu_custom_call.1}
  #allocation0 [shape = 'u32[]', space=smem, size = 0x4, offset = 0x4, fixed_abs, tag = 'smem constant byte address 0x4 - core index']
  #allocation1 [shape = 'u32[72,128]{1,0:T(1,128)}', space=vmem, size = 0x9000, scoped, tag = 'internal scratch']
  %s0 = inlined_call_operand.hbm [shape: f32[2,8,32], index: 0, kind: input, shape index: {}]
  %s1 = inlined_call_operand.hbm [shape: f32[2,8,32], index: 1, kind: input, shape index: {}]
  %s2 = inlined_call_operand.hbm [shape: f32[32,32], index: 2, kind: input, shape index: {}]
  %s3 = inlined_call_operand.vmem [shape: f32[1,32], index: 3, kind: input, shape index: {}]
  %s4 = inlined_call_operand.hbm [shape: f32[32,64], index: 4, kind: input, shape index: {}]
  %s5 = inlined_call_operand.vmem [shape: f32[1,64], index: 5, kind: input, shape index: {}]
  %s6 = inlined_call_operand.hbm [shape: f32[32,32], index: 6, kind: input, shape index: {}]
  %s7 = inlined_call_operand.vmem [shape: f32[1,32], index: 7, kind: input, shape index: {}]
  %s8 = inlined_call_operand.hbm [shape: f32[2,8,32], index: 8, kind: output, shape index: {}]
  %s9 = sld [smem:[#allocation0]]
  $region62: #{tpu_custom_call.1} parent=0
    _
  %s11 = ssub.s32 1, %s9
  %s12 = scalar_select 0, %s11, %s9
  $region1: #{tpu_custom_call.1} parent=0
    #allocation2 [shape = 'u8[8192]{0}', space=vmem, size = 0x2000, scoped, tag = 'input window, operand 0, single buffered']
    #allocation3 [shape = 's32[1]{0}', space=sflag, size = 0x4, scoped, tag = 'scoped memory for tpu_custom_call.1']
    #allocation4 [shape = 's32[1]{0}', space=sflag, size = 0x4, scoped, tag = 'scoped memory for tpu_custom_call.1']
    #allocation5 [shape = 'u8[8192]{0}', space=vmem, size = 0x2000, scoped, tag = 'input window, operand 1, single buffered']
    #allocation6 [shape = 's32[1]{0}', space=sflag, size = 0x4, scoped, tag = 'scoped memory for tpu_custom_call.1']
    #allocation7 [shape = 'u8[16384]{0}', space=vmem, size = 0x4000, scoped, tag = 'input window, operand 2, single buffered']
    #allocation8 [shape = 'u8[16384]{0}', space=vmem, size = 0x4000, scoped, tag = 'input window, operand 4, single buffered']
    #allocation9 [shape = 's32[1]{0}', space=sflag, size = 0x4, scoped, tag = 'scoped memory for tpu_custom_call.1']
    #allocation10 [shape = 'u8[16384]{0}', space=vmem, size = 0x4000, scoped, tag = 'input window, operand 6, single buffered']
    #allocation11 [shape = 'u8[8192]{0}', space=vmem, size = 0x2000, scoped, tag = 'output window, operand 0, single buffered']
    %13 = vsyncpa [#allocation3], 0
    %14 = vsyncpa [#allocation6], 0
    %15 = vsyncpa [#allocation9], 0
    %16 = vsyncpa [#allocation4], 0
    // Predicated region
    $region2: #{tpu_custom_call.1} parent=1 // pred_check
      _
    $region3: #{tpu_custom_call.1} parent=1 // pred_check_branch
      %18 = sbr.rel (0) target = $region5
    $region4: #{tpu_custom_call.1} parent=1 // pred_region
      %20 = vsyncadd [#allocation3], 0
      %s21 = sshll.u32 %s0, 4
      %s22 = int_to_ptr.hbm [resolvable:$true] %s21
      %s23 = sshll.u32 [#allocation2], 4
      %s24 = int_to_ptr.vmem [resolvable:$true] %s23
      %29 = dma.hbm_to_vmem [thread:$0]  %s22, 256, %s24, [#allocation3], 128, 128, 8
    $region5: #{tpu_custom_call.1} parent=1 // pred_fallthru
      _
    // Predicated region
    $region6: #{tpu_custom_call.1} parent=1 // pred_check
      _
    $region7: #{tpu_custom_call.1} parent=1 // pred_check_branch
      %31 = sbr.rel (0) target = $region9
    $region8: #{tpu_custom_call.1} parent=1 // pred_region
      %33 = vsyncadd [#allocation6], 0
      %s34 = sshll.u32 %s1, 4
      %s35 = int_to_ptr.hbm [resolvable:$true] %s34
      %s36 = sshll.u32 [#allocation5], 4
      %s37 = int_to_ptr.vmem [resolvable:$true] %s36
      %42 = dma.hbm_to_vmem [thread:$0]  %s35, 256, %s37, [#allocation6], 128, 128, 8
    $region9: #{tpu_custom_call.1} parent=1 // pred_fallthru
      _
    // Predicated region
    $region10: #{tpu_custom_call.1} parent=1 // pred_check
      _
    $region11: #{tpu_custom_call.1} parent=1 // pred_check_branch
      %44 = sbr.rel (0) target = $region13
    $region12: #{tpu_custom_call.1} parent=1 // pred_region
      %46 = vsyncadd [#allocation6], 0
      %s47 = sshll.u32 %s2, 4
      %s48 = int_to_ptr.hbm [resolvable:$true] %s47
      %s49 = sshll.u32 [#allocation7], 4
      %s50 = int_to_ptr.vmem [resolvable:$true] %s49
      %55 = dma.hbm_to_vmem [thread:$0]  %s48, 512, %s50, [#allocation6], 128, 128, 8
    $region13: #{tpu_custom_call.1} parent=1 // pred_fallthru
      _
    // Predicated region
    $region14: #{tpu_custom_call.1} parent=1 // pred_check
      _
    $region15: #{tpu_custom_call.1} parent=1 // pred_check_branch
      %57 = sbr.rel (0) target = $region17
    $region16: #{tpu_custom_call.1} parent=1 // pred_region
      _
    $region17: #{tpu_custom_call.1} parent=1 // pred_fallthru
      _
    // Predicated region
    $region18: #{tpu_custom_call.1} parent=1 // pred_check
      _
    $region19: #{tpu_custom_call.1} parent=1 // pred_check_branch
      %59 = sbr.rel (0) target = $region21
    $region20: #{tpu_custom_call.1} parent=1 // pred_region
      %61 = vsyncadd [#allocation9], 0
      %s62 = sshll.u32 %s4, 4
      %s63 = int_to_ptr.hbm [resolvable:$true] %s62
      %s64 = sshll.u32 [#allocation8], 4
      %s65 = int_to_ptr.vmem [resolvable:$true] %s64
      %70 = dma.hbm_to_vmem [thread:$0]  %s63, 512, %s65, [#allocation9], 128, 128, 8
    $region21: #{tpu_custom_call.1} parent=1 // pred_fallthru
      _
    // Predicated region
    $region22: #{tpu_custom_call.1} parent=1 // pred_check
      _
    $region23: #{tpu_custom_call.1} parent=1 // pred_check_branch
      %72 = sbr.rel (0) target = $region25
    $region24: #{tpu_custom_call.1} parent=1 // pred_region
      _
    $region25: #{tpu_custom_call.1} parent=1 // pred_fallthru
      _
    // Predicated region
    $region26: #{tpu_custom_call.1} parent=1 // pred_check
      _
    $region27: #{tpu_custom_call.1} parent=1 // pred_check_branch
      %74 = sbr.rel (0) target = $region29
    $region28: #{tpu_custom_call.1} parent=1 // pred_region
      %76 = vsyncadd [#allocation9], 0
      %s77 = sshll.u32 %s6, 4
      %s78 = int_to_ptr.hbm [resolvable:$true] %s77
      %s79 = sshll.u32 [#allocation10], 4
      %s80 = int_to_ptr.vmem [resolvable:$true] %s79
      %85 = dma.hbm_to_vmem [thread:$0]  %s78, 512, %s80, [#allocation9], 128, 128, 8
    $region29: #{tpu_custom_call.1} parent=1 // pred_fallthru
      _
    // Predicated region
    $region30: #{tpu_custom_call.1} parent=1 // pred_check
      _
    $region31: #{tpu_custom_call.1} parent=1 // pred_check_branch
      %87 = sbr.rel (0) target = $region33
    $region32: #{tpu_custom_call.1} parent=1 // pred_region
      _
    $region33: #{tpu_custom_call.1} parent=1 // pred_fallthru
      _
    // Predicated region
    $region34: #{tpu_custom_call.1} parent=1 // pred_check
      _
    $region35: #{tpu_custom_call.1} parent=1 // pred_check_branch
      %89 = sbr.rel (0) target = $region37
    $region36: #{tpu_custom_call.1} parent=1 // pred_region
      %91 = dma.done [#allocation3], 256
    $region37: #{tpu_custom_call.1} parent=1 // pred_fallthru
      _
    // Predicated region
    $region38: #{tpu_custom_call.1} parent=1 // pred_check
      _
    $region39: #{tpu_custom_call.1} parent=1 // pred_check_branch
      %93 = sbr.rel (0) target = $region41
    $region40: #{tpu_custom_call.1} parent=1 // pred_region
      %95 = dma.done [#allocation6], 256
    $region41: #{tpu_custom_call.1} parent=1 // pred_fallthru
      _
    // Predicated region
    $region42: #{tpu_custom_call.1} parent=1 // pred_check
      _
    $region43: #{tpu_custom_call.1} parent=1 // pred_check_branch
      %97 = sbr.rel (0) target = $region45
    $region44: #{tpu_custom_call.1} parent=1 // pred_region
      %99 = dma.done [#allocation6], 512
    $region45: #{tpu_custom_call.1} parent=1 // pred_fallthru
      _
    // Predicated region
    $region46: #{tpu_custom_call.1} parent=1 // pred_check
      _
    $region47: #{tpu_custom_call.1} parent=1 // pred_check_branch
      %101 = sbr.rel (0) target = $region49
    $region48: #{tpu_custom_call.1} parent=1 // pred_region
      %103 = dma.done [#allocation9], 512
    $region49: #{tpu_custom_call.1} parent=1 // pred_fallthru
      _
    // Predicated region
    $region50: #{tpu_custom_call.1} parent=1 // pred_check
      _
    $region51: #{tpu_custom_call.1} parent=1 // pred_check_branch
      %105 = sbr.rel (0) target = $region53
    $region52: #{tpu_custom_call.1} parent=1 // pred_region
      %107 = dma.done [#allocation9], 512
    $region53: #{tpu_custom_call.1} parent=1 // pred_fallthru
      _
    %v108 = vld [vmem:[#allocation2] sm:$0xff]
    %v109 = vld [vmem:[#allocation2 + $0x8] sm:$0xff]
    %v110 = vld [vmem:[#allocation5] sm:$0xff]
    %v111 = vld [vmem:[#allocation5 + $0x8] sm:$0xff]
    %v112 = vld [vmem:[#allocation7] sm:$0xff]
    %v113 = vld [vmem:[#allocation7 + $0x8] sm:$0xff]
    %v114 = vld [vmem:[#allocation7 + $0x10] sm:$0xff]
    %v115 = vld [vmem:[#allocation7 + $0x18] sm:$0xff]
    %v116 = vld [vmem:[%s3] sm:$0x1]
    %v118 = vperm.slane %v116, 0
    %vm120 = vcmask 261120
    %v122 = vsel %vm120, %v108, 0
    %v125 = vsel %vm120, %v109, 0
    %127 = vmatpush.msra.mxu0 0.0
    %128 = vmatpush.msra.mxu0 0.0
    %129 = vmatpush.msra.mxu0 0.0
    %130 = vmatpush.msra.mxu0 0.0
    %131 = vmatpush.msra.mxu0 0.0
    %132 = vmatpush.msra.mxu0 0.0
    %133 = vmatpush.msra.mxu0 0.0
    %134 = vmatpush.msra.mxu0 0.0
    %135 = vmatpush.msra.mxu0 0.0
    %136 = vmatpush.msra.mxu0 0.0
    %137 = vmatpush.msra.mxu0 0.0
    %138 = vmatpush.msra.mxu0 0.0
    %139 = vmatpush.msra.mxu0 %v115
    %140 = vmatpush.msra.mxu0 %v114
    %141 = vmatpush.msra.mxu0 %v113
    %142 = vmatpush.msra.mxu0 %v112
    %143 = vmatmul.f32.gmra.mxu0 %v122
    %v144 = vpop.f32.mrf.mxu0
    %v145 = vadd.f32 %v118, %v144
    %146 = vmatmul.f32.gmra.mxu0 %v125
    %v147 = vpop.f32.mrf.mxu0
    %v148 = vadd.f32 %v118, %v147
    %149 = vdwg.mxu0
    %v150 = vmul.f32 %v145, 0.35355338
    %v151 = vmul.f32 %v148, 0.35355338
    %v152 = vld [vmem:[#allocation8] sm:$0xff]
    %v153 = vld [vmem:[#allocation8 + $0x8] sm:$0xff]
    %v154 = vld [vmem:[#allocation8 + $0x10] sm:$0xff]
    %v155 = vld [vmem:[#allocation8 + $0x18] sm:$0xff]
    %v156 = vld [vmem:[%s5] sm:$0x1]
    %v158 = vperm.slane %v156, 0
    %v161 = vsel %vm120, %v110, 0
    %v164 = vsel %vm120, %v111, 0
    %166 = vmatpush.msra.mxu0 0.0
    %167 = vmatpush.msra.mxu0 0.0
    %168 = vmatpush.msra.mxu0 0.0
    %169 = vmatpush.msra.mxu0 0.0
    %170 = vmatpush.msra.mxu0 0.0
    %171 = vmatpush.msra.mxu0 0.0
    %172 = vmatpush.msra.mxu0 0.0
    %173 = vmatpush.msra.mxu0 0.0
    %174 = vmatpush.msra.mxu0 0.0
    %175 = vmatpush.msra.mxu0 0.0
    %176 = vmatpush.msra.mxu0 0.0
    %177 = vmatpush.msra.mxu0 0.0
    %178 = vmatpush.msra.mxu0 %v155
    %179 = vmatpush.msra.mxu0 %v154
    %180 = vmatpush.msra.mxu0 %v153
    %181 = vmatpush.msra.mxu0 %v152
    %182 = vmatmul.f32.gmra.mxu0 %v161
    %v183 = vpop.f32.mrf.mxu0
    %v184 = vadd.f32 %v158, %v183
    %185 = vmatmul.f32.gmra.mxu0 %v164
    %v186 = vpop.f32.mrf.mxu0
    %v187 = vadd.f32 %v158, %v186
    %188 = vdwg.mxu0
    %vm189 = vcmask 64512
    %v191 = vsel %vm189, %v150, 0
    %v194 = vsel %vm189, %v184, 0
    %196 = vmatpush.xpose.msra.mxu0 0.0
    %197 = vmatpush.xpose.msra.mxu0 0.0
    %198 = vmatpush.xpose.msra.mxu0 0.0
    %199 = vmatpush.xpose.msra.mxu0 0.0
    %200 = vmatpush.xpose.msra.mxu0 0.0
    %201 = vmatpush.xpose.msra.mxu0 0.0
    %202 = vmatpush.xpose.msra.mxu0 0.0
    %203 = vmatpush.xpose.msra.mxu0 0.0
    %204 = vmatpush.xpose.msra.mxu0 0.0
    %205 = vmatpush.xpose.msra.mxu0 0.0
    %206 = vmatpush.xpose.msra.mxu0 0.0
    %207 = vmatpush.xpose.msra.mxu0 0.0
    %208 = vmatpush.xpose.msra.mxu0 0.0
    %209 = vmatpush.xpose.msra.mxu0 0.0
    %210 = vmatpush.xpose.msra.mxu0 0.0
    %211 = vmatpush.xpose.msra.mxu0 %v194
    %212 = vmatmul.f32.gmra.mxu0 %v191
    %v213 = vpop.f32.mrf.mxu0
    %v214 = vadd.f32 0.0, %v213
    %215 = vdwg.mxu0
    %v216 = vsel %vm189, %v214, -inf
    %217 = vmax.xlane.f32.xlu0 %v216
    %v218 = vpop.xlane.xlu0 %217
    %v219 = vsub.f32 %v214, %v218
    %v220 = vmul.f32 %v219, 1.442695
    %v221 = vpow.pop %v220
    %v222 = vsel %vm189, %v221, 0.0
    %223 = vadd.xlane.f32.xlu0 %v222
    %v224 = vpop.xlane.xlu0 %223
    %v225 = vrcp.pop %v224
    %v226 = vmul.f32 %v224, %v225
    %v227 = vsub.f32 1.0, %v226
    %v228 = vmul.f32 %v225, %v227
    %v229 = vadd.f32 %v225, %v228
    %vm230 = vweird.f32 %v224
    %vm231 = vweird.f32 %v225
    %vm232 = vmor %vm230, %vm231
    %v233 = vsel %vm232, %v225, %v229
    %v234 = vand.u32 2147483647, %v224
    %vm235 = vcmp.eq.f32.partialorder %v234, 8.507059e+37
    %v236 = vand.u32 %v224, 2147483648
    %v237 = vor.u32 1.1754944e-38, %v236
    %v238 = vsel %vm235, %v237, %v233
    %v239 = vmul.f32 1.0, %v238
    %v240 = vmul.f32 %v221, %v239
    %241 = vrot.lane.b32.xlu0 %v184, 96
    %v242 = vpop.permute.xlu0 %241
    %v245 = vsel %vm189, %v240, 0
    %247 = vmatpush.msra.mxu0 0.0
    %248 = vmatpush.msra.mxu0 0.0
    %249 = vmatpush.msra.mxu0 0.0
    %250 = vmatpush.msra.mxu0 0.0
    %251 = vmatpush.msra.mxu0 0.0
    %252 = vmatpush.msra.mxu0 0.0
    %253 = vmatpush.msra.mxu0 0.0
    %254 = vmatpush.msra.mxu0 0.0
    %255 = vmatpush.msra.mxu0 0.0
    %256 = vmatpush.msra.mxu0 0.0
    %257 = vmatpush.msra.mxu0 0.0
    %258 = vmatpush.msra.mxu0 0.0
    %259 = vmatpush.msra.mxu0 0.0
    %260 = vmatpush.msra.mxu0 0.0
    %261 = vmatpush.msra.mxu0 0.0
    %262 = vmatpush.msra.mxu0 %v242
    %263 = vmatmul.f32.gmra.mxu0 %v245
    %v264 = vpop.f32.mrf.mxu0
    %v265 = vadd.f32 0.0, %v264
    %266 = vdwg.mxu0
    %267 = vrot.lane.b32.xlu0 %v150, 120
    %v268 = vpop.permute.xlu0 %267
    %269 = vrot.lane.b32.xlu0 %v184, 120
    %v270 = vpop.permute.xlu0 %269
    %v271 = vsel %vm189, %v268, 0
    %v273 = vsel %vm189, %v270, 0
    %275 = vmatpush.xpose.msra.mxu0 0.0
    %276 = vmatpush.xpose.msra.mxu0 0.0
    %277 = vmatpush.xpose.msra.mxu0 0.0
    %278 = vmatpush.xpose.msra.mxu0 0.0
    %279 = vmatpush.xpose.msra.mxu0 0.0
    %280 = vmatpush.xpose.msra.mxu0 0.0
    %281 = vmatpush.xpose.msra.mxu0 0.0
    %282 = vmatpush.xpose.msra.mxu0 0.0
    %283 = vmatpush.xpose.msra.mxu0 0.0
    %284 = vmatpush.xpose.msra.mxu0 0.0
    %285 = vmatpush.xpose.msra.mxu0 0.0
    %286 = vmatpush.xpose.msra.mxu0 0.0
    %287 = vmatpush.xpose.msra.mxu0 0.0
    %288 = vmatpush.xpose.msra.mxu0 0.0
    %289 = vmatpush.xpose.msra.mxu0 0.0
    %290 = vmatpush.xpose.msra.mxu0 %v273
    %291 = vmatmul.f32.gmra.mxu0 %v271
    %v292 = vpop.f32.mrf.mxu0
    %v293 = vadd.f32 0.0, %v292
    %294 = vdwg.mxu0
    %v295 = vsel %vm189, %v293, -inf
    %296 = vmax.xlane.f32.xlu0 %v295
    %v297 = vpop.xlane.xlu0 %296
    %v298 = vsub.f32 %v293, %v297
    %v299 = vmul.f32 %v298, 1.442695
    %v300 = vpow.pop %v299
    %v301 = vsel %vm189, %v300, 0.0
    %302 = vadd.xlane.f32.xlu0 %v301
    %v303 = vpop.xlane.xlu0 %302
    %v304 = vrcp.pop %v303
    %v305 = vmul.f32 %v303, %v304
    %v306 = vsub.f32 1.0, %v305
    %v307 = vmul.f32 %v304, %v306
    %v308 = vadd.f32 %v304, %v307
    %vm309 = vweird.f32 %v303
    %vm310 = vweird.f32 %v304
    %vm311 = vmor %vm309, %vm310
    %v312 = vsel %vm311, %v304, %v308
    %v313 = vand.u32 2147483647, %v303
    %vm314 = vcmp.eq.f32.partialorder %v313, 8.507059e+37
    %v315 = vand.u32 %v303, 2147483648
    %v316 = vor.u32 1.1754944e-38, %v315
    %v317 = vsel %vm314, %v316, %v312
    %v318 = vmul.f32 1.0, %v317
    %v319 = vmul.f32 %v300, %v318
    %320 = vrot.lane.b32.xlu0 %v184, 88
    %v321 = vpop.permute.xlu0 %320
    %v324 = vsel %vm189, %v319, 0
    %326 = vmatpush.msra.mxu0 0.0
    %327 = vmatpush.msra.mxu0 0.0
    %328 = vmatpush.msra.mxu0 0.0
    %329 = vmatpush.msra.mxu0 0.0
    %330 = vmatpush.msra.mxu0 0.0
    %331 = vmatpush.msra.mxu0 0.0
    %332 = vmatpush.msra.mxu0 0.0
    %333 = vmatpush.msra.mxu0 0.0
    %334 = vmatpush.msra.mxu0 0.0
    %335 = vmatpush.msra.mxu0 0.0
    %336 = vmatpush.msra.mxu0 0.0
    %337 = vmatpush.msra.mxu0 0.0
    %338 = vmatpush.msra.mxu0 0.0
    %339 = vmatpush.msra.mxu0 0.0
    %340 = vmatpush.msra.mxu0 0.0
    %341 = vmatpush.msra.mxu0 %v321
    %342 = vmatmul.f32.gmra.mxu0 %v324
    %v343 = vpop.f32.mrf.mxu0
    %v344 = vadd.f32 0.0, %v343
    %345 = vdwg.mxu0
    %346 = vrot.lane.b32.xlu0 %v150, 112
    %v347 = vpop.permute.xlu0 %346
    %348 = vrot.lane.b32.xlu0 %v184, 112
    %v349 = vpop.permute.xlu0 %348
    %v350 = vsel %vm189, %v347, 0
    %v352 = vsel %vm189, %v349, 0
    %354 = vmatpush.xpose.msra.mxu0 0.0
    %355 = vmatpush.xpose.msra.mxu0 0.0
    %356 = vmatpush.xpose.msra.mxu0 0.0
    %357 = vmatpush.xpose.msra.mxu0 0.0
    %358 = vmatpush.xpose.msra.mxu0 0.0
    %359 = vmatpush.xpose.msra.mxu0 0.0
    %360 = vmatpush.xpose.msra.mxu0 0.0
    %361 = vmatpush.xpose.msra.mxu0 0.0
    %362 = vmatpush.xpose.msra.mxu0 0.0
    %363 = vmatpush.xpose.msra.mxu0 0.0
    %364 = vmatpush.xpose.msra.mxu0 0.0
    %365 = vmatpush.xpose.msra.mxu0 0.0
    %366 = vmatpush.xpose.msra.mxu0 0.0
    %367 = vmatpush.xpose.msra.mxu0 0.0
    %368 = vmatpush.xpose.msra.mxu0 0.0
    %369 = vmatpush.xpose.msra.mxu0 %v352
    %370 = vmatmul.f32.gmra.mxu0 %v350
    %v371 = vpop.f32.mrf.mxu0
    %v372 = vadd.f32 0.0, %v371
    %373 = vdwg.mxu0
    %v374 = vsel %vm189, %v372, -inf
    %375 = vmax.xlane.f32.xlu0 %v374
    %v376 = vpop.xlane.xlu0 %375
    %v377 = vsub.f32 %v372, %v376
    %v378 = vmul.f32 %v377, 1.442695
    %v379 = vpow.pop %v378
    %v380 = vsel %vm189, %v379, 0.0
    %381 = vadd.xlane.f32.xlu0 %v380
    %v382 = vpop.xlane.xlu0 %381
    %v383 = vrcp.pop %v382
    %v384 = vmul.f32 %v382, %v383
    %v385 = vsub.f32 1.0, %v384
    %v386 = vmul.f32 %v383, %v385
    %v387 = vadd.f32 %v383, %v386
    %vm388 = vweird.f32 %v382
    %vm389 = vweird.f32 %v383
    %vm390 = vmor %vm388, %vm389
    %v391 = vsel %vm390, %v383, %v387
    %v392 = vand.u32 2147483647, %v382
    %vm393 = vcmp.eq.f32.partialorder %v392, 8.507059e+37
    %v394 = vand.u32 %v382, 2147483648
    %v395 = vor.u32 1.1754944e-38, %v394
    %v396 = vsel %vm393, %v395, %v391
    %v397 = vmul.f32 1.0, %v396
    %v398 = vmul.f32 %v379, %v397
    %399 = vrot.lane.b32.xlu0 %v184, 80
    %v400 = vpop.permute.xlu0 %399
    %v403 = vsel %vm189, %v398, 0
    %405 = vmatpush.msra.mxu0 0.0
    %406 = vmatpush.msra.mxu0 0.0
    %407 = vmatpush.msra.mxu0 0.0
    %408 = vmatpush.msra.mxu0 0.0
    %409 = vmatpush.msra.mxu0 0.0
    %410 = vmatpush.msra.mxu0 0.0
    %411 = vmatpush.msra.mxu0 0.0
    %412 = vmatpush.msra.mxu0 0.0
    %413 = vmatpush.msra.mxu0 0.0
    %414 = vmatpush.msra.mxu0 0.0
    %415 = vmatpush.msra.mxu0 0.0
    %416 = vmatpush.msra.mxu0 0.0
    %417 = vmatpush.msra.mxu0 0.0
    %418 = vmatpush.msra.mxu0 0.0
    %419 = vmatpush.msra.mxu0 0.0
    %420 = vmatpush.msra.mxu0 %v400
    %421 = vmatmul.f32.gmra.mxu0 %v403
    %v422 = vpop.f32.mrf.mxu0
    %v423 = vadd.f32 0.0, %v422
    %424 = vdwg.mxu0
    %425 = vrot.lane.b32.xlu0 %v150, 104
    %v426 = vpop.permute.xlu0 %425
    %427 = vrot.lane.b32.xlu0 %v184, 104
    %v428 = vpop.permute.xlu0 %427
    %v429 = vsel %vm189, %v426, 0
    %v431 = vsel %vm189, %v428, 0
    %433 = vmatpush.xpose.msra.mxu0 0.0
    %434 = vmatpush.xpose.msra.mxu0 0.0
    %435 = vmatpush.xpose.msra.mxu0 0.0
    %436 = vmatpush.xpose.msra.mxu0 0.0
    %437 = vmatpush.xpose.msra.mxu0 0.0
    %438 = vmatpush.xpose.msra.mxu0 0.0
    %439 = vmatpush.xpose.msra.mxu0 0.0
    %440 = vmatpush.xpose.msra.mxu0 0.0
    %441 = vmatpush.xpose.msra.mxu0 0.0
    %442 = vmatpush.xpose.msra.mxu0 0.0
    %443 = vmatpush.xpose.msra.mxu0 0.0
    %444 = vmatpush.xpose.msra.mxu0 0.0
    %445 = vmatpush.xpose.msra.mxu0 0.0
    %446 = vmatpush.xpose.msra.mxu0 0.0
    %447 = vmatpush.xpose.msra.mxu0 0.0
    %448 = vmatpush.xpose.msra.mxu0 %v431
    %449 = vmatmul.f32.gmra.mxu0 %v429
    %v450 = vpop.f32.mrf.mxu0
    %v451 = vadd.f32 0.0, %v450
    %452 = vdwg.mxu0
    %v453 = vsel %vm189, %v451, -inf
    %454 = vmax.xlane.f32.xlu0 %v453
    %v455 = vpop.xlane.xlu0 %454
    %v456 = vsub.f32 %v451, %v455
    %v457 = vmul.f32 %v456, 1.442695
    %v458 = vpow.pop %v457
    %v459 = vsel %vm189, %v458, 0.0
    %460 = vadd.xlane.f32.xlu0 %v459
    %v461 = vpop.xlane.xlu0 %460
    %v462 = vrcp.pop %v461
    %v463 = vmul.f32 %v461, %v462
    %v464 = vsub.f32 1.0, %v463
    %v465 = vmul.f32 %v462, %v464
    %v466 = vadd.f32 %v462, %v465
    %vm467 = vweird.f32 %v461
    %vm468 = vweird.f32 %v462
    %vm469 = vmor %vm467, %vm468
    %v470 = vsel %vm469, %v462, %v466
    %v471 = vand.u32 2147483647, %v461
    %vm472 = vcmp.eq.f32.partialorder %v471, 8.507059e+37
    %v473 = vand.u32 %v461, 2147483648
    %v474 = vor.u32 1.1754944e-38, %v473
    %v475 = vsel %vm472, %v474, %v470
    %v476 = vmul.f32 1.0, %v475
    %v477 = vmul.f32 %v458, %v476
    %478 = vrot.lane.b32.xlu0 %v184, 72
    %v479 = vpop.permute.xlu0 %478
    %v482 = vsel %vm189, %v477, 0
    %484 = vmatpush.msra.mxu0 0.0
    %485 = vmatpush.msra.mxu0 0.0
    %486 = vmatpush.msra.mxu0 0.0
    %487 = vmatpush.msra.mxu0 0.0
    %488 = vmatpush.msra.mxu0 0.0
    %489 = vmatpush.msra.mxu0 0.0
    %490 = vmatpush.msra.mxu0 0.0
    %491 = vmatpush.msra.mxu0 0.0
    %492 = vmatpush.msra.mxu0 0.0
    %493 = vmatpush.msra.mxu0 0.0
    %494 = vmatpush.msra.mxu0 0.0
    %495 = vmatpush.msra.mxu0 0.0
    %496 = vmatpush.msra.mxu0 0.0
    %497 = vmatpush.msra.mxu0 0.0
    %498 = vmatpush.msra.mxu0 0.0
    %499 = vmatpush.msra.mxu0 %v479
    %500 = vmatmul.f32.gmra.mxu0 %v482
    %v501 = vpop.f32.mrf.mxu0
    %v502 = vadd.f32 0.0, %v501
    %503 = vdwg.mxu0
    %505 = vrot.lane.b32.xlu0 %v344, 8
    %v506 = vpop.permute.xlu0 %505
    %509 = vrot.lane.b32.xlu0 %v423, 16
    %v510 = vpop.permute.xlu0 %509
    %513 = vrot.lane.b32.xlu0 %v502, 24
    %v514 = vpop.permute.xlu0 %513
    %v516 = vsel %vm189, %v265, %v506
    %vm517 = vcmask 130048
    %v518 = vsel %vm517, %v516, %v510
    %vm519 = vcmask 195584
    %v520 = vsel %vm519, %v518, %v514
    %v522 = vsel %vm189, %v151, 0
    %v525 = vsel %vm189, %v187, 0
    %527 = vmatpush.xpose.msra.mxu0 0.0
    %528 = vmatpush.xpose.msra.mxu0 0.0
    %529 = vmatpush.xpose.msra.mxu0 0.0
    %530 = vmatpush.xpose.msra.mxu0 0.0
    %531 = vmatpush.xpose.msra.mxu0 0.0
    %532 = vmatpush.xpose.msra.mxu0 0.0
    %533 = vmatpush.xpose.msra.mxu0 0.0
    %534 = vmatpush.xpose.msra.mxu0 0.0
    %535 = vmatpush.xpose.msra.mxu0 0.0
    %536 = vmatpush.xpose.msra.mxu0 0.0
    %537 = vmatpush.xpose.msra.mxu0 0.0
    %538 = vmatpush.xpose.msra.mxu0 0.0
    %539 = vmatpush.xpose.msra.mxu0 0.0
    %540 = vmatpush.xpose.msra.mxu0 0.0
    %541 = vmatpush.xpose.msra.mxu0 0.0
    %542 = vmatpush.xpose.msra.mxu0 %v525
    %543 = vmatmul.f32.gmra.mxu0 %v522
    %v544 = vpop.f32.mrf.mxu0
    %v545 = vadd.f32 0.0, %v544
    %546 = vdwg.mxu0
    %v547 = vsel %vm189, %v545, -inf
    %548 = vmax.xlane.f32.xlu0 %v547
    %v549 = vpop.xlane.xlu0 %548
    %v550 = vsub.f32 %v545, %v549
    %v551 = vmul.f32 %v550, 1.442695
    %v552 = vpow.pop %v551
    %v553 = vsel %vm189, %v552, 0.0
    %554 = vadd.xlane.f32.xlu0 %v553
    %v555 = vpop.xlane.xlu0 %554
    %v556 = vrcp.pop %v555
    %v557 = vmul.f32 %v555, %v556
    %v558 = vsub.f32 1.0, %v557
    %v559 = vmul.f32 %v556, %v558
    %v560 = vadd.f32 %v556, %v559
    %vm561 = vweird.f32 %v555
    %vm562 = vweird.f32 %v556
    %vm563 = vmor %vm561, %vm562
    %v564 = vsel %vm563, %v556, %v560
    %v565 = vand.u32 2147483647, %v555
    %vm566 = vcmp.eq.f32.partialorder %v565, 8.507059e+37
    %v567 = vand.u32 %v555, 2147483648
    %v568 = vor.u32 1.1754944e-38, %v567
    %v569 = vsel %vm566, %v568, %v564
    %v570 = vmul.f32 1.0, %v569
    %v571 = vmul.f32 %v552, %v570
    %572 = vrot.lane.b32.xlu0 %v187, 96
    %v573 = vpop.permute.xlu0 %572
    %v576 = vsel %vm189, %v571, 0
    %578 = vmatpush.msra.mxu0 0.0
    %579 = vmatpush.msra.mxu0 0.0
    %580 = vmatpush.msra.mxu0 0.0
    %581 = vmatpush.msra.mxu0 0.0
    %582 = vmatpush.msra.mxu0 0.0
    %583 = vmatpush.msra.mxu0 0.0
    %584 = vmatpush.msra.mxu0 0.0
    %585 = vmatpush.msra.mxu0 0.0
    %586 = vmatpush.msra.mxu0 0.0
    %587 = vmatpush.msra.mxu0 0.0
    %588 = vmatpush.msra.mxu0 0.0
    %589 = vmatpush.msra.mxu0 0.0
    %590 = vmatpush.msra.mxu0 0.0
    %591 = vmatpush.msra.mxu0 0.0
    %592 = vmatpush.msra.mxu0 0.0
    %593 = vmatpush.msra.mxu0 %v573
    %594 = vmatmul.f32.gmra.mxu0 %v576
    %v595 = vpop.f32.mrf.mxu0
    %v596 = vadd.f32 0.0, %v595
    %597 = vdwg.mxu0
    %598 = vrot.lane.b32.xlu0 %v151, 120
    %v599 = vpop.permute.xlu0 %598
    %600 = vrot.lane.b32.xlu0 %v187, 120
    %v601 = vpop.permute.xlu0 %600
    %v602 = vsel %vm189, %v599, 0
    %v604 = vsel %vm189, %v601, 0
    %606 = vmatpush.xpose.msra.mxu0 0.0
    %607 = vmatpush.xpose.msra.mxu0 0.0
    %608 = vmatpush.xpose.msra.mxu0 0.0
    %609 = vmatpush.xpose.msra.mxu0 0.0
    %610 = vmatpush.xpose.msra.mxu0 0.0
    %611 = vmatpush.xpose.msra.mxu0 0.0
    %612 = vmatpush.xpose.msra.mxu0 0.0
    %613 = vmatpush.xpose.msra.mxu0 0.0
    %614 = vmatpush.xpose.msra.mxu0 0.0
    %615 = vmatpush.xpose.msra.mxu0 0.0
    %616 = vmatpush.xpose.msra.mxu0 0.0
    %617 = vmatpush.xpose.msra.mxu0 0.0
    %618 = vmatpush.xpose.msra.mxu0 0.0
    %619 = vmatpush.xpose.msra.mxu0 0.0
    %620 = vmatpush.xpose.msra.mxu0 0.0
    %621 = vmatpush.xpose.msra.mxu0 %v604
    %622 = vmatmul.f32.gmra.mxu0 %v602
    %v623 = vpop.f32.mrf.mxu0
    %v624 = vadd.f32 0.0, %v623
    %625 = vdwg.mxu0
    %v626 = vsel %vm189, %v624, -inf
    %627 = vmax.xlane.f32.xlu0 %v626
    %v628 = vpop.xlane.xlu0 %627
    %v629 = vsub.f32 %v624, %v628
    %v630 = vmul.f32 %v629, 1.442695
    %v631 = vpow.pop %v630
    %v632 = vsel %vm189, %v631, 0.0
    %633 = vadd.xlane.f32.xlu0 %v632
    %v634 = vpop.xlane.xlu0 %633
    %v635 = vrcp.pop %v634
    %v636 = vmul.f32 %v634, %v635
    %v637 = vsub.f32 1.0, %v636
    %v638 = vmul.f32 %v635, %v637
    %v639 = vadd.f32 %v635, %v638
    %vm640 = vweird.f32 %v634
    %vm641 = vweird.f32 %v635
    %vm642 = vmor %vm640, %vm641
    %v643 = vsel %vm642, %v635, %v639
    %v644 = vand.u32 2147483647, %v634
    %vm645 = vcmp.eq.f32.partialorder %v644, 8.507059e+37
    %v646 = vand.u32 %v634, 2147483648
    %v647 = vor.u32 1.1754944e-38, %v646
    %v648 = vsel %vm645, %v647, %v643
    %v649 = vmul.f32 1.0, %v648
    %v650 = vmul.f32 %v631, %v649
    %651 = vrot.lane.b32.xlu0 %v187, 88
    %v652 = vpop.permute.xlu0 %651
    %v655 = vsel %vm189, %v650, 0
    %657 = vmatpush.msra.mxu0 0.0
    %658 = vmatpush.msra.mxu0 0.0
    %659 = vmatpush.msra.mxu0 0.0
    %660 = vmatpush.msra.mxu0 0.0
    %661 = vmatpush.msra.mxu0 0.0
    %662 = vmatpush.msra.mxu0 0.0
    %663 = vmatpush.msra.mxu0 0.0
    %664 = vmatpush.msra.mxu0 0.0
    %665 = vmatpush.msra.mxu0 0.0
    %666 = vmatpush.msra.mxu0 0.0
    %667 = vmatpush.msra.mxu0 0.0
    %668 = vmatpush.msra.mxu0 0.0
    %669 = vmatpush.msra.mxu0 0.0
    %670 = vmatpush.msra.mxu0 0.0
    %671 = vmatpush.msra.mxu0 0.0
    %672 = vmatpush.msra.mxu0 %v652
    %673 = vmatmul.f32.gmra.mxu0 %v655
    %v674 = vpop.f32.mrf.mxu0
    %v675 = vadd.f32 0.0, %v674
    %676 = vdwg.mxu0
    %677 = vrot.lane.b32.xlu0 %v151, 112
    %v678 = vpop.permute.xlu0 %677
    %679 = vrot.lane.b32.xlu0 %v187, 112
    %v680 = vpop.permute.xlu0 %679
    %v681 = vsel %vm189, %v678, 0
    %v683 = vsel %vm189, %v680, 0
    %685 = vmatpush.xpose.msra.mxu0 0.0
    %686 = vmatpush.xpose.msra.mxu0 0.0
    %687 = vmatpush.xpose.msra.mxu0 0.0
    %688 = vmatpush.xpose.msra.mxu0 0.0
    %689 = vmatpush.xpose.msra.mxu0 0.0
    %690 = vmatpush.xpose.msra.mxu0 0.0
    %691 = vmatpush.xpose.msra.mxu0 0.0
    %692 = vmatpush.xpose.msra.mxu0 0.0
    %693 = vmatpush.xpose.msra.mxu0 0.0
    %694 = vmatpush.xpose.msra.mxu0 0.0
    %695 = vmatpush.xpose.msra.mxu0 0.0
    %696 = vmatpush.xpose.msra.mxu0 0.0
    %697 = vmatpush.xpose.msra.mxu0 0.0
    %698 = vmatpush.xpose.msra.mxu0 0.0
    %699 = vmatpush.xpose.msra.mxu0 0.0
    %700 = vmatpush.xpose.msra.mxu0 %v683
    %701 = vmatmul.f32.gmra.mxu0 %v681
    %v702 = vpop.f32.mrf.mxu0
    %v703 = vadd.f32 0.0, %v702
    %704 = vdwg.mxu0
    %v705 = vsel %vm189, %v703, -inf
    %706 = vmax.xlane.f32.xlu0 %v705
    %v707 = vpop.xlane.xlu0 %706
    %v708 = vsub.f32 %v703, %v707
    %v709 = vmul.f32 %v708, 1.442695
    %v710 = vpow.pop %v709
    %v711 = vsel %vm189, %v710, 0.0
    %712 = vadd.xlane.f32.xlu0 %v711
    %v713 = vpop.xlane.xlu0 %712
    %v714 = vrcp.pop %v713
    %v715 = vmul.f32 %v713, %v714
    %v716 = vsub.f32 1.0, %v715
    %v717 = vmul.f32 %v714, %v716
    %v718 = vadd.f32 %v714, %v717
    %vm719 = vweird.f32 %v713
    %vm720 = vweird.f32 %v714
    %vm721 = vmor %vm719, %vm720
    %v722 = vsel %vm721, %v714, %v718
    %v723 = vand.u32 2147483647, %v713
    %vm724 = vcmp.eq.f32.partialorder %v723, 8.507059e+37
    %v725 = vand.u32 %v713, 2147483648
    %v726 = vor.u32 1.1754944e-38, %v725
    %v727 = vsel %vm724, %v726, %v722
    %v728 = vmul.f32 1.0, %v727
    %v729 = vmul.f32 %v710, %v728
    %730 = vrot.lane.b32.xlu0 %v187, 80
    %v731 = vpop.permute.xlu0 %730
    %v734 = vsel %vm189, %v729, 0
    %736 = vmatpush.msra.mxu0 0.0
    %737 = vmatpush.msra.mxu0 0.0
    %738 = vmatpush.msra.mxu0 0.0
    %739 = vmatpush.msra.mxu0 0.0
    %740 = vmatpush.msra.mxu0 0.0
    %741 = vmatpush.msra.mxu0 0.0
    %742 = vmatpush.msra.mxu0 0.0
    %743 = vmatpush.msra.mxu0 0.0
    %744 = vmatpush.msra.mxu0 0.0
    %745 = vmatpush.msra.mxu0 0.0
    %746 = vmatpush.msra.mxu0 0.0
    %747 = vmatpush.msra.mxu0 0.0
    %748 = vmatpush.msra.mxu0 0.0
    %749 = vmatpush.msra.mxu0 0.0
    %750 = vmatpush.msra.mxu0 0.0
    %751 = vmatpush.msra.mxu0 %v731
    %752 = vmatmul.f32.gmra.mxu0 %v734
    %v753 = vpop.f32.mrf.mxu0
    %v754 = vadd.f32 0.0, %v753
    %755 = vdwg.mxu0
    %756 = vrot.lane.b32.xlu0 %v151, 104
    %v757 = vpop.permute.xlu0 %756
    %758 = vrot.lane.b32.xlu0 %v187, 104
    %v759 = vpop.permute.xlu0 %758
    %v760 = vsel %vm189, %v757, 0
    %v762 = vsel %vm189, %v759, 0
    %764 = vmatpush.xpose.msra.mxu0 0.0
    %765 = vmatpush.xpose.msra.mxu0 0.0
    %766 = vmatpush.xpose.msra.mxu0 0.0
    %767 = vmatpush.xpose.msra.mxu0 0.0
    %768 = vmatpush.xpose.msra.mxu0 0.0
    %769 = vmatpush.xpose.msra.mxu0 0.0
    %770 = vmatpush.xpose.msra.mxu0 0.0
    %771 = vmatpush.xpose.msra.mxu0 0.0
    %772 = vmatpush.xpose.msra.mxu0 0.0
    %773 = vmatpush.xpose.msra.mxu0 0.0
    %774 = vmatpush.xpose.msra.mxu0 0.0
    %775 = vmatpush.xpose.msra.mxu0 0.0
    %776 = vmatpush.xpose.msra.mxu0 0.0
    %777 = vmatpush.xpose.msra.mxu0 0.0
    %778 = vmatpush.xpose.msra.mxu0 0.0
    %779 = vmatpush.xpose.msra.mxu0 %v762
    %780 = vmatmul.f32.gmra.mxu0 %v760
    %v781 = vpop.f32.mrf.mxu0
    %v782 = vadd.f32 0.0, %v781
    %783 = vdwg.mxu0
    %v784 = vsel %vm189, %v782, -inf
    %785 = vmax.xlane.f32.xlu0 %v784
    %v786 = vpop.xlane.xlu0 %785
    %v787 = vsub.f32 %v782, %v786
    %v788 = vmul.f32 %v787, 1.442695
    %v789 = vpow.pop %v788
    %v790 = vsel %vm189, %v789, 0.0
    %791 = vadd.xlane.f32.xlu0 %v790
    %v792 = vpop.xlane.xlu0 %791
    %v793 = vrcp.pop %v792
    %v794 = vmul.f32 %v792, %v793
    %v795 = vsub.f32 1.0, %v794
    %v796 = vmul.f32 %v793, %v795
    %v797 = vadd.f32 %v793, %v796
    %vm798 = vweird.f32 %v792
    %vm799 = vweird.f32 %v793
    %vm800 = vmor %vm798, %vm799
    %v801 = vsel %vm800, %v793, %v797
    %v802 = vand.u32 2147483647, %v792
    %vm803 = vcmp.eq.f32.partialorder %v802, 8.507059e+37
    %v804 = vand.u32 %v792, 2147483648
    %v805 = vor.u32 1.1754944e-38, %v804
    %v806 = vsel %vm803, %v805, %v801
    %v807 = vmul.f32 1.0, %v806
    %v808 = vmul.f32 %v789, %v807
    %809 = vrot.lane.b32.xlu0 %v187, 72
    %v810 = vpop.permute.xlu0 %809
    %v813 = vsel %vm189, %v808, 0
    %815 = vmatpush.msra.mxu0 0.0
    %816 = vmatpush.msra.mxu0 0.0
    %817 = vmatpush.msra.mxu0 0.0
    %818 = vmatpush.msra.mxu0 0.0
    %819 = vmatpush.msra.mxu0 0.0
    %820 = vmatpush.msra.mxu0 0.0
    %821 = vmatpush.msra.mxu0 0.0
    %822 = vmatpush.msra.mxu0 0.0
    %823 = vmatpush.msra.mxu0 0.0
    %824 = vmatpush.msra.mxu0 0.0
    %825 = vmatpush.msra.mxu0 0.0
    %826 = vmatpush.msra.mxu0 0.0
    %827 = vmatpush.msra.mxu0 0.0
    %828 = vmatpush.msra.mxu0 0.0
    %829 = vmatpush.msra.mxu0 0.0
    %830 = vmatpush.msra.mxu0 %v810
    %831 = vmatmul.f32.gmra.mxu0 %v813
    %v832 = vpop.f32.mrf.mxu0
    %v833 = vadd.f32 0.0, %v832
    %834 = vdwg.mxu0
    %836 = vrot.lane.b32.xlu0 %v675, 8
    %v837 = vpop.permute.xlu0 %836
    %840 = vrot.lane.b32.xlu0 %v754, 16
    %v841 = vpop.permute.xlu0 %840
    %844 = vrot.lane.b32.xlu0 %v833, 24
    %v845 = vpop.permute.xlu0 %844
    %v847 = vsel %vm189, %v596, %v837
    %v848 = vsel %vm517, %v847, %v841
    %v849 = vsel %vm519, %v848, %v845
    %v850 = vld [vmem:[#allocation10] sm:$0xff]
    %v851 = vld [vmem:[#allocation10 + $0x8] sm:$0xff]
    %v852 = vld [vmem:[#allocation10 + $0x10] sm:$0xff]
    %v853 = vld [vmem:[#allocation10 + $0x18] sm:$0xff]
    %v854 = vld [vmem:[%s7] sm:$0x1]
    %v856 = vperm.slane %v854, 0
    %v859 = vsel %vm120, %v520, 0
    %v862 = vsel %vm120, %v849, 0
    %864 = vmatpush.msra.mxu0 0.0
    %865 = vmatpush.msra.mxu0 0.0
    %866 = vmatpush.msra.mxu0 0.0
    %867 = vmatpush.msra.mxu0 0.0
    %868 = vmatpush.msra.mxu0 0.0
    %869 = vmatpush.msra.mxu0 0.0
    %870 = vmatpush.msra.mxu0 0.0
    %871 = vmatpush.msra.mxu0 0.0
    %872 = vmatpush.msra.mxu0 0.0
    %873 = vmatpush.msra.mxu0 0.0
    %874 = vmatpush.msra.mxu0 0.0
    %875 = vmatpush.msra.mxu0 0.0
    %876 = vmatpush.msra.mxu0 %v853
    %877 = vmatpush.msra.mxu0 %v852
    %878 = vmatpush.msra.mxu0 %v851
    %879 = vmatpush.msra.mxu0 %v850
    %880 = vmatmul.f32.gmra.mxu0 %v859
    %v881 = vpop.f32.mrf.mxu0
    %v882 = vadd.f32 %v856, %v881
    %883 = vmatmul.f32.gmra.mxu0 %v862
    %v884 = vpop.f32.mrf.mxu0
    %v885 = vadd.f32 %v856, %v884
    %886 = vdwg.mxu0
    %887 = vst.msk [vmem:[#allocation11] sm:$0xff] %vm120, %v882
    %888 = vst.msk [vmem:[#allocation11 + $0x8] sm:$0xff] %vm120, %v885
    // Predicated region
    $region54: #{tpu_custom_call.1} parent=1 // pred_check
      _
    $region55: #{tpu_custom_call.1} parent=1 // pred_check_branch
      %890 = sbr.rel (0) target = $region57
    $region56: #{tpu_custom_call.1} parent=1 // pred_region
      %892 = vsyncadd [#allocation4], 0
      %s893 = sshll.u32 [#allocation11], 4
      %s894 = int_to_ptr.vmem [resolvable:$true] %s893
      %s895 = sshll.u32 %s8, 4
      %s896 = int_to_ptr.hbm [resolvable:$true] %s895
      %901 = dma.vmem_to_hbm [thread:$0]  %s894, 256, %s896, [#allocation4], 128, 128, 8
    $region57: #{tpu_custom_call.1} parent=1 // pred_fallthru
      _
    // Predicated region
    $region58: #{tpu_custom_call.1} parent=1 // pred_check
      _
    $region59: #{tpu_custom_call.1} parent=1 // pred_check_branch
      %903 = sbr.rel (0) target = $region61
    $region60: #{tpu_custom_call.1} parent=1 // pred_region
      %905 = dma.done [#allocation4], 256
    $region61: #{tpu_custom_call.1} parent=1 // pred_fallthru
      _
    %906 = vsyncpa [#allocation3], 1
    %907 = vsyncpa [#allocation6], 1
    %908 = vsyncpa [#allocation9], 1
    %909 = vsyncpa [#allocation4], 1

</llo_original>
